<compile_context>
chip_gen: v7x
topology: tpu7x:2x2x1
jax: 0.10.0
libtpu: 0.0.40
codegen_flags: <defaults>
</compile_context>

<pallas_src>
import functools

import jax
import jax.numpy as jnp
from jax import lax
from jax.experimental import pallas as pl
from jax.experimental.pallas import tpu as pltpu

_LANES = 128            # vreg lane width
_R_TILE_MAX = 128       # rows (N*C) per block; multiple of 32 -> legal for all dtypes
_BLOCK_BYTES = 4 << 20  # ~4 MiB per input block: on the HBM roofline plateau and,
                        # double-buffered, inside v5e's 16 MiB default scoped VMEM.


def _round_up(x, m):
    return ((x + m - 1) // m) * m


def _sublane_align(dtype):
    itemsize = jnp.dtype(dtype).itemsize
    return {4: 8, 2: 16, 1: 32}.get(itemsize, 8)


def _gap_kernel(x_ref, o_ref, acc_ref, *, hw, inv_hw):
    """One (row-tile, hw-tile) grid step of the global average pool.

    x_ref:   (r_t, hw_t) input block (VMEM); hw_t is a multiple of 128.
    o_ref:   (r_t, 1)    output block, resident across the k (HW) grid axis.
    acc_ref: (r_t, 128)  f32 partial-sum scratch, persists across grid steps.
    """
    r_t, hw_t = x_ref.shape
    k = pl.program_id(1)

    # Static reduction bookkeeping (hw and hw_t are compile-time constants).
    n_blocks = -(-hw // hw_t)                 # number of HW blocks
    last_len = hw - (n_blocks - 1) * hw_t     # valid columns in the last block
    full_cols = hw_t // _LANES                # 128-lane columns in a full block
    last_full = last_len // _LANES
    last_tail = last_len % _LANES

    @pl.when(k == 0)
    def _init():
        acc_ref[...] = jnp.zeros_like(acc_ref)

    def fold(n_full, tail):
        """Fold `n_full` full 128-lane columns plus a `tail`-lane partial
        column of this block into the accumulator (n_full / tail are static)."""
        acc = acc_ref[...]
        if n_full > 0:
            def body(j, a):
                start = pl.multiple_of(j * _LANES, _LANES)
                return a + x_ref[:, pl.ds(start, _LANES)].astype(jnp.float32)
            acc = lax.fori_loop(0, n_full, body, acc, unroll=min(4, n_full))
        if tail > 0:
            # Partial last column: lanes >= tail hold stale VMEM -> mask them.
            col = x_ref[:, pl.ds(n_full * _LANES, _LANES)].astype(jnp.float32)
            lane = lax.broadcasted_iota(jnp.int32, col.shape, 1)
            acc = acc + jnp.where(lane < tail, col, 0.0)
        acc_ref[...] = acc

    if n_blocks > 1:
        @pl.when(k < n_blocks - 1)
        def _full_block():
            fold(full_cols, 0)

    @pl.when(k == n_blocks - 1)
    def _last_block_and_finalize():
        fold(last_full, last_tail)
        # Single cross-lane (XLU) reduce per row tile, scale by the true
        # 1/(H*W) compile-time constant (multiply, never divide), cast, store.
        total = jnp.sum(acc_ref[...], axis=-1, keepdims=True)   # (r_t, 1) f32
        o_ref[...] = (total * inv_hw).astype(o_ref.dtype)


def global_avg_pool2d(x, *, block_bytes=_BLOCK_BYTES):
    """x: (N, C, H, W) -> (N, C); mean over spatial dims (matches PyTorch)."""
    n, c, h, w = x.shape
    rows = n * c
    hw = h * w
    itemsize = jnp.dtype(x.dtype).itemsize

    # Free view on contiguous NCHW (mirrors .view((N, C, -1)) + row flatten).
    x_flat = x.reshape(rows, hw)

    # Row tile: dtype-dependent sublane alignment, capped so the f32
    # accumulator + in-flight column slices stay inside the vreg file.
    sub = _sublane_align(x.dtype)
    r_t = min(_round_up(rows, sub), _R_TILE_MAX)

    # HW tile from a byte budget so every DMA step is roofline-sized even for
    # small N*C; always a multiple of 128 (ragged tail is masked in-kernel).
    hw_cover = _round_up(hw, _LANES)
    hw_budget = max(_LANES, (block_bytes // (r_t * itemsize)) // _LANES * _LANES)
    hw_t = min(hw_cover, hw_budget)

    grid = (pl.cdiv(rows, r_t), pl.cdiv(hw, hw_t))
    inv_hw = 1.0 / float(hw)

    kernel = functools.partial(_gap_kernel, hw=hw, inv_hw=inv_hw)

    out = pl.pallas_call(
        kernel,
        out_shape=jax.ShapeDtypeStruct((rows, 1), x.dtype),
        grid_spec=pltpu.PrefetchScalarGridSpec(
            num_scalar_prefetch=0,
            grid=grid,
            in_specs=[pl.BlockSpec((r_t, hw_t), lambda ri, k: (ri, k))],
            # Same output block for every k => resident accumulator output,
            # written back to HBM exactly once per row tile.
            out_specs=pl.BlockSpec((r_t, 1), lambda ri, k: (ri, 0)),
            scratch_shapes=[pltpu.VMEM((r_t, _LANES), jnp.float32)],
        ),
        compiler_params=pltpu.CompilerParams(
            # TODO(synk): when N*C fits a single row tile only one v7x
            # TensorCore gets work; splitting the HW reduction into per-core
            # partial sums would need a second combine pass.
            dimension_semantics=("parallel", "arbitrary"),
        ),
    )(x_flat)

    return out.reshape(n, c)


if __name__ == "__main__":
    # Small shape consistent with the module (batch=2, channels=4, spatial=16).
    N, C, H, W = 2, 4, 16, 16
    x = jax.random.normal(jax.random.PRNGKey(0), (N, C, H, W), dtype=jnp.float32)
    y = global_avg_pool2d(x)
    jax.block_until_ready(y)
    y_ref = jnp.mean(x.reshape(N, C, -1), axis=2)
    assert y.shape == (N, C)
    assert jnp.allclose(y, y_ref, atol=1e-5, rtol=1e-5)

    # Larger spatial extent: single wide roofline-sized block per row tile.
    x2 = jax.random.normal(jax.random.PRNGKey(1), (1, 16, 96, 96), jnp.float32)
    y2 = global_avg_pool2d(x2)
    jax.block_until_ready(y2)
    y2_ref = jnp.mean(x2.reshape(1, 16, -1), axis=2)
    assert y2.shape == (1, 16)
    assert jnp.allclose(y2, y2_ref, atol=1e-5, rtol=1e-5)

    # Ragged everything: rows not sublane-aligned, H*W not 128-aligned, plus a
    # tiny forced block budget to exercise the multi-block masked-tail path.
    x3 = jax.random.normal(jax.random.PRNGKey(2), (1, 5, 20, 13), jnp.float32)
    y3 = global_avg_pool2d(x3, block_bytes=4096)
    jax.block_until_ready(y3)
    y3_ref = jnp.mean(x3.reshape(1, 5, -1), axis=2)
    assert y3.shape == (1, 5)
    assert jnp.allclose(y3, y3_ref, atol=1e-5, rtol=1e-5)

    print("KERNEL_OK")
</pallas_src>

<mosaic_0001>
module attributes {stable_mosaic.version = 11 : i64} {
  func.func @_gap_kernel(%arg0: i32, %arg1: i32, %arg2: memref<8x256xf32, #tpu.memory_space<vmem>>, %arg3: memref<8x1xf32, #tpu.memory_space<vmem>>, %arg4: memref<8x128xf32, #tpu.memory_space<vmem>>) attributes {dimension_semantics = [#tpu.dimension_semantics<parallel>, #tpu.dimension_semantics<arbitrary>], iteration_bounds = array<i64: 1, 1>, scalar_prefetch = 0 : i64, scratch_operands = 1 : i64, tpu.core_type = #tpu.core_type<tc>, window_params = [{transform_indices = @transform_0, window_bounds = array<i64: 8, 256>}, {transform_indices = @transform_1, window_bounds = array<i64: 8, 1>}]} {
    %c0_i32 = arith.constant 0 : i32
    %0 = arith.cmpi eq, %arg1, %c0_i32 : i32
    %1 = arith.extui %0 : i1 to i32
    %c0_i32_0 = arith.constant 0 : i32
    %2 = arith.cmpi ne, %1, %c0_i32_0 : i32
    scf.if %2 {
      %cst = arith.constant 0.000000e+00 : f32
      %6 = vector.broadcast %cst : f32 to vector<8x128xf32>
      %c0 = arith.constant 0 : index
      %c0_3 = arith.constant 0 : index
      %7 = vector.load %arg4[%c0, %c0_3] : memref<8x128xf32, #tpu.memory_space<vmem>>, vector<8x128xf32>
      tpu.vector_store %arg4[%c0, %c0_3], %6 {strides = array<i32>} : memref<8x128xf32, #tpu.memory_space<vmem>>, vector<8x128xf32>,
    } else {
    }
    %c0_i32_1 = arith.constant 0 : i32
    %3 = arith.cmpi eq, %arg1, %c0_i32_1 : i32
    %4 = arith.extui %3 : i1 to i32
    %c0_i32_2 = arith.constant 0 : i32
    %5 = arith.cmpi ne, %4, %c0_i32_2 : i32
    scf.if %5 {
      %c0 = arith.constant 0 : index
      %c0_3 = arith.constant 0 : index
      %6 = vector.load %arg4[%c0, %c0_3] : memref<8x128xf32, #tpu.memory_space<vmem>>, vector<8x128xf32>
      %c0_i32_4 = arith.constant 0 : i32
      %c128_i32 = arith.constant 128 : i32
      %7 = arith.muli %c0_i32_4, %c128_i32 : i32
      %8 = tpu.assume_multiple %7, 128 : i32
      %c0_5 = arith.constant 0 : index
      %9 = arith.index_cast %8 : i32 to index
      %10 = vector.load %arg2[%c0_5, %9] : memref<8x256xf32, #tpu.memory_space<vmem>>, vector<8x128xf32>
      %11 = arith.addf %6, %10 : vector<8x128xf32>
      %c1_i32 = arith.constant 1 : i32
      %c128_i32_6 = arith.constant 128 : i32
      %12 = arith.muli %c1_i32, %c128_i32_6 : i32
      %13 = tpu.assume_multiple %12, 128 : i32
      %c0_7 = arith.constant 0 : index
      %14 = arith.index_cast %13 : i32 to index
      %15 = vector.load %arg2[%c0_7, %14] : memref<8x256xf32, #tpu.memory_space<vmem>>, vector<8x128xf32>
      %16 = arith.addf %11, %15 : vector<8x128xf32>
      %c2_i32 = arith.constant 2 : i32
      %c0_8 = arith.constant 0 : index
      %c0_9 = arith.constant 0 : index
      %17 = vector.load %arg4[%c0_8, %c0_9] : memref<8x128xf32, #tpu.memory_space<vmem>>, vector<8x128xf32>
      tpu.vector_store %arg4[%c0_8, %c0_9], %16 {strides = array<i32>} : memref<8x128xf32, #tpu.memory_space<vmem>>, vector<8x128xf32>,
      %c0_10 = arith.constant 0 : index
      %c0_11 = arith.constant 0 : index
      %18 = vector.load %arg4[%c0_10, %c0_11] : memref<8x128xf32, #tpu.memory_space<vmem>>, vector<8x128xf32>
      %cst = arith.constant dense<0.000000e+00> : vector<8xf32>
      %19 = vector.multi_reduction <add>, %18, %cst [1] : vector<8x128xf32> to vector<8xf32>
      %20 = vector.shape_cast %19 : vector<8xf32> to vector<8x1xf32>
      %cst_12 = arith.constant 3.906250e-03 : f32
      %21 = vector.broadcast %cst_12 : f32 to vector<8x1xf32>
      %22 = arith.mulf %20, %21 : vector<8x1xf32>
      %c0_13 = arith.constant 0 : index
      %c0_14 = arith.constant 0 : index
      %23 = vector.load %arg3[%c0_13, %c0_14] : memref<8x1xf32, #tpu.memory_space<vmem>>, vector<8x1xf32>
      tpu.vector_store %arg3[%c0_13, %c0_14], %22 {strides = array<i32>} : memref<8x1xf32, #tpu.memory_space<vmem>>, vector<8x1xf32>,
    } else {
    }
    return
  }
  func.func @transform_0(%arg0: i32, %arg1: i32) -> (i32, i32) {
    %c0_i32 = arith.constant 0 : i32
    return %arg0, %arg1 : i32, i32
  }
  func.func @transform_1(%arg0: i32, %arg1: i32) -> (i32, i32) {
    %c0_i32 = arith.constant 0 : i32
    %c0_i32_0 = arith.constant 0 : i32
    return %arg0, %c0_i32 : i32, i32
  }
}

</mosaic_0001>

<llo_original>
// kernel: tpu_custom_call.1
$region0: #{tpu_custom_call.1}
  #allocation0 [shape = 'u32[]', space=smem, size = 0x4, offset = 0x4, fixed_abs, tag = 'smem constant byte address 0x4 - core index']
  #allocation1 [shape = 'u32[144,128]{1,0:T(1,128)}', space=vmem, size = 0x12000, scoped, tag = 'internal scratch']
  #allocation2 [shape = 'f32[8,128]{1,0:T(8,128)}', space=vmem, size = 0x1000, scoped, tag = 'scratch operand']
  %s0 = inlined_call_operand.hbm [shape: f32[8,256], index: 0, kind: input, shape index: {}]
  %s1 = inlined_call_operand.vmem [shape: f32[8,1], index: 1, kind: output, shape index: {}]
  %s2 = sld [smem:[#allocation0]]
  $region22: #{tpu_custom_call.1} parent=0
    _
  %s4 = ssub.s32 1, %s2
  %s5 = scalar_select 0, %s4, %s2
  $region1: #{tpu_custom_call.1} parent=0
    #allocation3 [shape = 'u8[8192]{0}', space=vmem, size = 0x2000, scoped, tag = 'input window, operand 0, single buffered']
    #allocation4 [shape = 's32[1]{0}', space=sflag, size = 0x4, scoped, tag = 'scoped memory for tpu_custom_call.1']
    %6 = vsyncpa [#allocation4], 0
    // Predicated region
    $region2: #{tpu_custom_call.1} parent=1 // pred_check
      _
    $region3: #{tpu_custom_call.1} parent=1 // pred_check_branch
      %8 = sbr.rel (0) target = $region5
    $region4: #{tpu_custom_call.1} parent=1 // pred_region
      %s10 = ssub.s32 256, 256
      %11 = vsyncadd [#allocation4], %s10
      %s13 = sshll.u32 [#allocation3], 4
      %s14 = int_to_ptr.vmem [resolvable:$true] %s13
      %16 = dma.hbm_to_vmem [thread:$0]  %s0, 256, %s14, [#allocation4]
    $region5: #{tpu_custom_call.1} parent=1 // pred_fallthru
      _
    // Predicated region
    $region6: #{tpu_custom_call.1} parent=1 // pred_check
      _
    $region7: #{tpu_custom_call.1} parent=1 // pred_check_branch
      %18 = sbr.rel (0) target = $region9
    $region8: #{tpu_custom_call.1} parent=1 // pred_region
      %19 = dma.done [#allocation4], 256
    $region9: #{tpu_custom_call.1} parent=1 // pred_fallthru
      _
    %p20 = scmp.eq.s32.totalorder 0, 0
    // Predicated region
    $region10: #{tpu_custom_call.1} parent=1 // pred_check
      %p21 = pneg %p20
    $region11: #{tpu_custom_call.1} parent=1 // pred_check_branch
      %23 = sbr.rel (%p21) target = $region13
    $region12: #{tpu_custom_call.1} parent=1 // pred_region
      %24 = vst [vmem:[#allocation2] sm:$0xff] 0.0
      %v25 = vld [vmem:[#allocation2] sm:$0xff]
      %v26 = vld [vmem:[#allocation3] sm:$0xff]
      %v27 = vadd.f32 %v25, %v26
      %s28 = scalar_lea.vmem [#allocation3], 8
      %v29 = vld [vmem:[%s28] sm:$0xff]
      %v30 = vadd.f32 %v27, %v29
      %31 = vst [vmem:[#allocation2] sm:$0xff] %v30
      %v32 = vld [vmem:[#allocation2] sm:$0xff]
      %33 = vadd.xlane.f32.xlu0 %v32
      %v34 = vpop.xlane.xlu0 %33
      %v35 = vmul.f32 %v34, 0.00390625
      %vm36 = vcmask 7168
      %37 = vst.msk [vmem:[%s1] sm:$0xff] %vm36, %v35
    $region13: #{tpu_custom_call.1} parent=1 // pred_fallthru
      _
    // Predicated region
    $region14: #{tpu_custom_call.1} parent=1 // pred_check
      _
    $region15: #{tpu_custom_call.1} parent=1 // pred_check_branch
      %39 = sbr.rel (0) target = $region17
    $region16: #{tpu_custom_call.1} parent=1 // pred_region
      _
    $region17: #{tpu_custom_call.1} parent=1 // pred_fallthru
      _
    // Predicated region
    $region18: #{tpu_custom_call.1} parent=1 // pred_check
      _
    $region19: #{tpu_custom_call.1} parent=1 // pred_check_branch
      %41 = sbr.rel (0) target = $region21
    $region20: #{tpu_custom_call.1} parent=1 // pred_region
      _
    $region21: #{tpu_custom_call.1} parent=1 // pred_fallthru
      _
    %42 = vsyncpa [#allocation4], 1

</llo_original>
